<compile_context>
chip_gen: v5e
topology: v5e:2x2
jax: 0.10.0
libtpu: 0.0.40
codegen_flags: <defaults>
</compile_context>

<pallas_src>
import jax
import jax.numpy as jnp
from jax.experimental import pallas as pl
from jax.experimental.pallas import tpu as pltpu

INPUT_SIZE = 100
HIDDEN_LAYERS = [256, 128, 64]
OUTPUT_SIZE = 10
BN_EPS = 1e-5
LEAKY_SLOPE = 0.01

# Lane-friendly (padded) widths used inside the kernel.
H1, H2, H3P = 256, 128, 128          # hidden-3 (64) zero-padded -> 128
OUT_PAD = 128                        # final output (10) zero-padded -> 128 (lane-dense store)
WEIGHT_DTYPE = jnp.bfloat16
ACT_DTYPE = jnp.bfloat16
MAX_TILE_B = 128                     # cap live f32 epilogue tile at 128x256
TILE_ALIGN = 16                      # bf16 sublane packing


def _round_up(x, m):
    return ((x + m - 1) // m) * m


def _choose_tile_b(batch):
    # Small batch: single tile whose block dims equal the full array dims (always legal).
    if batch <= 2 * TILE_ALIGN:
        return batch
    # Otherwise: aim for >= 2 tiles (v7x megacore), multiple of 16, capped at 128.
    return min(MAX_TILE_B, _round_up(pl.cdiv(batch, 2), TILE_ALIGN))


def _fused_mlp_kernel(x_ref,
                      w1_ref, b1_ref, w2_ref, b2_ref,
                      w3_ref, b3_ref, w4_ref, b4_ref,
                      o_ref):
    """Whole 4-layer MLP (eval mode) for one batch tile.

    Per layer: y = h @ W_folded + b_folded (+ LeakyReLU(0.01) on hidden layers).
    BN (running stats) pre-folded into W/b; Dropout is identity in eval mode.
    h stays bf16 between layers (native MXU operands); the bias/LeakyReLU epilogue is f32.
    """
    h = x_ref[...]                                     # (tile_b, 100) bf16
    layers = ((w1_ref, b1_ref, True),
              (w2_ref, b2_ref, True),
              (w3_ref, b3_ref, True),
              (w4_ref, b4_ref, False))
    for w_ref, b_ref, is_hidden in layers:
        y = jnp.dot(h, w_ref[...], preferred_element_type=jnp.float32)   # bf16 MXU, f32 acc
        y = y + b_ref[...]                             # f32 epilogue, (1, N) broadcast
        if is_hidden:
            y = jnp.where(y >= 0.0, y, LEAKY_SLOPE * y)   # LeakyReLU(0.01)
            h = y.astype(ACT_DTYPE)                    # single cast per layer
        else:
            h = y
    o_ref[...] = h.astype(o_ref.dtype)


def _fused_forward(x_bf16, w1, b1, w2, b2, w3, b3, w4, b4, *, tile_b):
    b_pad = x_bf16.shape[0]
    grid = (b_pad // tile_b,)

    def _const(arr):
        # Constant index map: weights/biases fetched once, resident across batch tiles.
        return pl.BlockSpec(arr.shape, lambda i: (0, 0))

    params = (w1, b1, w2, b2, w3, b3, w4, b4)
    flops = 2 * b_pad * (INPUT_SIZE * H1 + H1 * H2 + H2 * H3P + H3P * OUT_PAD)
    bytes_accessed = (x_bf16.size * x_bf16.dtype.itemsize
                      + sum(a.size * a.dtype.itemsize for a in params)
                      + b_pad * OUT_PAD * 4)

    return pl.pallas_call(
        _fused_mlp_kernel,
        out_shape=jax.ShapeDtypeStruct((b_pad, OUT_PAD), jnp.float32),
        grid=grid,
        in_specs=[
            pl.BlockSpec((tile_b, INPUT_SIZE), lambda i: (i, 0)),   # x: unpadded K=100
            _const(w1), _const(b1),
            _const(w2), _const(b2),
            _const(w3), _const(b3),
            _const(w4), _const(b4),
        ],
        out_specs=pl.BlockSpec((tile_b, OUT_PAD), lambda i: (i, 0)),
        compiler_params=pltpu.CompilerParams(
            dimension_semantics=("parallel",),   # batch tiles shard across TCs (v7x)
        ),
        cost_estimate=pl.CostEstimate(
            flops=flops, transcendentals=0, bytes_accessed=bytes_accessed),
    )(x_bf16, *params)


@jax.jit
def quantum_nn_forward(x, w1, b1, w2, b2, w3, b3, w4, b4):
    """Eval-mode forward. x: (B, INPUT_SIZE) f32 -> (B, OUTPUT_SIZE) f32."""
    batch = x.shape[0]
    tile_b = _choose_tile_b(batch)
    b_pad = _round_up(batch, tile_b)
    x_bf16 = x.astype(ACT_DTYPE)                 # halves input DMA bytes into the kernel
    if b_pad != batch:
        # Only the batch dim is (minimally) padded; feature dim stays at 100.
        x_bf16 = jnp.pad(x_bf16, ((0, b_pad - batch), (0, 0)))
    out = _fused_forward(x_bf16, w1, b1, w2, b2, w3, b3, w4, b4, tile_b=tile_b)
    return out[:batch, :OUTPUT_SIZE]


def init_params(key):
    """PyTorch-default init: nn.Linear U(-1/sqrt(fan_in), 1/sqrt(fan_in)); BatchNorm1d
    (eval: gamma=1, beta=0, running_mean=0, running_var=1) folded into W/b.
    Weights are zero-padded to the kernel's lane-friendly shapes:
      W1 (100,256), W2 (256,128), W3 (128,128) [64 real cols], W4 (128,128) [64 real rows, 10 real cols].
    Returns [w1, b1, w2, b2, w3, b3, w4, b4]: weights bf16, biases f32 shaped (1, N)."""
    sizes = [INPUT_SIZE] + HIDDEN_LAYERS + [OUTPUT_SIZE]
    pad_in = [INPUT_SIZE, H1, H2, H3P]
    pad_out = [H1, H2, H3P, OUT_PAD]
    n_layers = len(sizes) - 1
    flat = []
    for li in range(n_layers):
        fan_in, fan_out = sizes[li], sizes[li + 1]
        key, kw, kb = jax.random.split(key, 3)
        bound = fan_in ** -0.5
        w = jax.random.uniform(kw, (fan_in, fan_out), jnp.float32, -bound, bound)
        b = jax.random.uniform(kb, (fan_out,), jnp.float32, -bound, bound)
        if li < len(HIDDEN_LAYERS):
            gamma = jnp.ones((fan_out,), jnp.float32)
            beta = jnp.zeros((fan_out,), jnp.float32)
            running_mean = jnp.zeros((fan_out,), jnp.float32)
            running_var = jnp.ones((fan_out,), jnp.float32)
            # Fold eval-mode BN into the linear layer.
            scale = gamma / jnp.sqrt(running_var + BN_EPS)
            shift = beta - running_mean * scale
            w = w * scale[None, :]
            b = b * scale + shift
        # Zero-pad rows (contraction K) / columns (output N) to the kernel shapes.
        w = jnp.pad(w, ((0, pad_in[li] - fan_in), (0, pad_out[li] - fan_out)))
        b = jnp.pad(b, (0, pad_out[li] - fan_out))
        flat.append(w.astype(WEIGHT_DTYPE))
        flat.append(b.reshape(1, -1).astype(jnp.float32))
    return flat


def _reference_forward(x, flat_params):
    """Pure-JAX f32 reference using the (folded, bf16-stored) params; padded rows/cols are
    zero so slicing to the real widths is exact."""
    real_in = [INPUT_SIZE, 256, 128, 64]
    real_out = [256, 128, 64, OUTPUT_SIZE]
    h = x.astype(jnp.float32)
    for i in range(4):
        w = flat_params[2 * i].astype(jnp.float32)[:real_in[i], :real_out[i]]
        b = flat_params[2 * i + 1][0, :real_out[i]]
        h = h @ w + b
        if i < 3:
            h = jnp.where(h >= 0.0, h, LEAKY_SLOPE * h)
    return h


if __name__ == "__main__":
    key = jax.random.PRNGKey(0)
    key, kx = jax.random.split(key)

    batch = 8
    x = jax.random.normal(kx, (batch, INPUT_SIZE), jnp.float32)

    flat_params = init_params(key)

    out = quantum_nn_forward(x, *flat_params)
    out = jax.block_until_ready(out)

    assert out.shape == (batch, OUTPUT_SIZE), out.shape
    assert out.dtype == jnp.float32
    assert bool(jnp.all(jnp.isfinite(out)))

    ref = _reference_forward(x, flat_params)
    max_err = float(jnp.max(jnp.abs(out - ref)))
    assert max_err < 5e-2, f"max abs err vs reference = {max_err}"

    print("KERNEL_OK")
</pallas_src>

<mosaic_0001>
module attributes {stable_mosaic.version = 11 : i64} {
  func.func @_fused_mlp_kernel(%arg0: i32, %arg1: memref<8x100xbf16, #tpu.memory_space<vmem>>, %arg2: memref<100x256xbf16, #tpu.memory_space<vmem>>, %arg3: memref<1x256xf32, #tpu.memory_space<vmem>>, %arg4: memref<256x128xbf16, #tpu.memory_space<vmem>>, %arg5: memref<1x128xf32, #tpu.memory_space<vmem>>, %arg6: memref<128x128xbf16, #tpu.memory_space<vmem>>, %arg7: memref<1x128xf32, #tpu.memory_space<vmem>>, %arg8: memref<128x128xbf16, #tpu.memory_space<vmem>>, %arg9: memref<1x128xf32, #tpu.memory_space<vmem>>, %arg10: memref<8x128xf32, #tpu.memory_space<vmem>>) attributes {dimension_semantics = [#tpu.dimension_semantics<parallel>], iteration_bounds = array<i64: 1>, scalar_prefetch = 0 : i64, scratch_operands = 0 : i64, tpu.core_type = #tpu.core_type<tc>, window_params = [{transform_indices = @transform_0, window_bounds = array<i64: 8, 100>}, {pipeline_mode = #tpu.pipeline_mode<synchronous>, transform_indices = @transform_1, window_bounds = array<i64: 100, 256>}, {pipeline_mode = #tpu.pipeline_mode<synchronous>, transform_indices = @transform_2, window_bounds = array<i64: 1, 256>}, {pipeline_mode = #tpu.pipeline_mode<synchronous>, transform_indices = @transform_3, window_bounds = array<i64: 256, 128>}, {pipeline_mode = #tpu.pipeline_mode<synchronous>, transform_indices = @transform_4, window_bounds = array<i64: 1, 128>}, {pipeline_mode = #tpu.pipeline_mode<synchronous>, transform_indices = @transform_5, window_bounds = array<i64: 128, 128>}, {pipeline_mode = #tpu.pipeline_mode<synchronous>, transform_indices = @transform_6, window_bounds = array<i64: 1, 128>}, {pipeline_mode = #tpu.pipeline_mode<synchronous>, transform_indices = @transform_7, window_bounds = array<i64: 128, 128>}, {pipeline_mode = #tpu.pipeline_mode<synchronous>, transform_indices = @transform_8, window_bounds = array<i64: 1, 128>}, {transform_indices = @transform_9, window_bounds = array<i64: 8, 128>}]} {
    %c0 = arith.constant 0 : index
    %c0_0 = arith.constant 0 : index
    %0 = vector.load %arg1[%c0, %c0_0] : memref<8x100xbf16, #tpu.memory_space<vmem>>, vector<8x100xbf16>
    %c0_1 = arith.constant 0 : index
    %c0_2 = arith.constant 0 : index
    %1 = vector.load %arg2[%c0_1, %c0_2] : memref<100x256xbf16, #tpu.memory_space<vmem>>, vector<100x256xbf16>
    %cst = arith.constant dense<0.000000e+00> : vector<8x256xf32>
    %2 = tpu.matmul %0, %1, %cst {dimension_numbers = #tpu.dot_dimension_numbers<[1], [0], [0], [1], [0, 0, 1, 1], [], []>} : vector<8x100xbf16>, vector<100x256xbf16>, vector<8x256xf32> -> vector<8x256xf32>
    %c0_3 = arith.constant 0 : index
    %c0_4 = arith.constant 0 : index
    %3 = vector.load %arg3[%c0_3, %c0_4] : memref<1x256xf32, #tpu.memory_space<vmem>>, vector<1x256xf32>
    %4 = vector.broadcast %3 : vector<1x256xf32> to vector<8x256xf32>
    %5 = arith.addf %2, %4 : vector<8x256xf32>
    %cst_5 = arith.constant 0.000000e+00 : f32
    %6 = vector.broadcast %cst_5 : f32 to vector<8x256xf32>
    %7 = arith.cmpf oge, %5, %6 : vector<8x256xf32>
    %cst_6 = arith.constant 0.00999999977 : f32
    %8 = vector.broadcast %cst_6 : f32 to vector<8x256xf32>
    %9 = arith.mulf %8, %5 : vector<8x256xf32>
    %10 = arith.select %7, %5, %9 : vector<8x256xi1>, vector<8x256xf32>
    %11 = arith.truncf %10 : vector<8x256xf32> to vector<8x256xbf16>
    %c0_7 = arith.constant 0 : index
    %c0_8 = arith.constant 0 : index
    %12 = vector.load %arg4[%c0_7, %c0_8] : memref<256x128xbf16, #tpu.memory_space<vmem>>, vector<256x128xbf16>
    %cst_9 = arith.constant dense<0.000000e+00> : vector<8x128xf32>
    %13 = tpu.matmul %11, %12, %cst_9 {dimension_numbers = #tpu.dot_dimension_numbers<[1], [0], [0], [1], [0, 0, 1, 1], [], []>} : vector<8x256xbf16>, vector<256x128xbf16>, vector<8x128xf32> -> vector<8x128xf32>
    %c0_10 = arith.constant 0 : index
    %c0_11 = arith.constant 0 : index
    %14 = vector.load %arg5[%c0_10, %c0_11] : memref<1x128xf32, #tpu.memory_space<vmem>>, vector<1x128xf32>
    %15 = vector.broadcast %14 : vector<1x128xf32> to vector<8x128xf32>
    %16 = arith.addf %13, %15 : vector<8x128xf32>
    %cst_12 = arith.constant 0.000000e+00 : f32
    %17 = vector.broadcast %cst_12 : f32 to vector<8x128xf32>
    %18 = arith.cmpf oge, %16, %17 : vector<8x128xf32>
    %cst_13 = arith.constant 0.00999999977 : f32
    %19 = vector.broadcast %cst_13 : f32 to vector<8x128xf32>
    %20 = arith.mulf %19, %16 : vector<8x128xf32>
    %21 = arith.select %18, %16, %20 : vector<8x128xi1>, vector<8x128xf32>
    %22 = arith.truncf %21 : vector<8x128xf32> to vector<8x128xbf16>
    %c0_14 = arith.constant 0 : index
    %c0_15 = arith.constant 0 : index
    %23 = vector.load %arg6[%c0_14, %c0_15] : memref<128x128xbf16, #tpu.memory_space<vmem>>, vector<128x128xbf16>
    %cst_16 = arith.constant dense<0.000000e+00> : vector<8x128xf32>
    %24 = tpu.matmul %22, %23, %cst_16 {dimension_numbers = #tpu.dot_dimension_numbers<[1], [0], [0], [1], [0, 0, 1, 1], [], []>} : vector<8x128xbf16>, vector<128x128xbf16>, vector<8x128xf32> -> vector<8x128xf32>
    %c0_17 = arith.constant 0 : index
    %c0_18 = arith.constant 0 : index
    %25 = vector.load %arg7[%c0_17, %c0_18] : memref<1x128xf32, #tpu.memory_space<vmem>>, vector<1x128xf32>
    %26 = vector.broadcast %25 : vector<1x128xf32> to vector<8x128xf32>
    %27 = arith.addf %24, %26 : vector<8x128xf32>
    %cst_19 = arith.constant 0.000000e+00 : f32
    %28 = vector.broadcast %cst_19 : f32 to vector<8x128xf32>
    %29 = arith.cmpf oge, %27, %28 : vector<8x128xf32>
    %cst_20 = arith.constant 0.00999999977 : f32
    %30 = vector.broadcast %cst_20 : f32 to vector<8x128xf32>
    %31 = arith.mulf %30, %27 : vector<8x128xf32>
    %32 = arith.select %29, %27, %31 : vector<8x128xi1>, vector<8x128xf32>
    %33 = arith.truncf %32 : vector<8x128xf32> to vector<8x128xbf16>
    %c0_21 = arith.constant 0 : index
    %c0_22 = arith.constant 0 : index
    %34 = vector.load %arg8[%c0_21, %c0_22] : memref<128x128xbf16, #tpu.memory_space<vmem>>, vector<128x128xbf16>
    %cst_23 = arith.constant dense<0.000000e+00> : vector<8x128xf32>
    %35 = tpu.matmul %33, %34, %cst_23 {dimension_numbers = #tpu.dot_dimension_numbers<[1], [0], [0], [1], [0, 0, 1, 1], [], []>} : vector<8x128xbf16>, vector<128x128xbf16>, vector<8x128xf32> -> vector<8x128xf32>
    %c0_24 = arith.constant 0 : index
    %c0_25 = arith.constant 0 : index
    %36 = vector.load %arg9[%c0_24, %c0_25] : memref<1x128xf32, #tpu.memory_space<vmem>>, vector<1x128xf32>
    %37 = vector.broadcast %36 : vector<1x128xf32> to vector<8x128xf32>
    %38 = arith.addf %35, %37 : vector<8x128xf32>
    %c0_26 = arith.constant 0 : index
    %c0_27 = arith.constant 0 : index
    %39 = vector.load %arg10[%c0_26, %c0_27] : memref<8x128xf32, #tpu.memory_space<vmem>>, vector<8x128xf32>
    tpu.vector_store %arg10[%c0_26, %c0_27], %38 {strides = array<i32>} : memref<8x128xf32, #tpu.memory_space<vmem>>, vector<8x128xf32>,
    return
  }
  func.func @transform_0(%arg0: i32) -> (i32, i32) {
    %c0_i32 = arith.constant 0 : i32
    %c0_i32_0 = arith.constant 0 : i32
    return %arg0, %c0_i32 : i32, i32
  }
  func.func @transform_1(%arg0: i32) -> (i32, i32) {
    %c0_i32 = arith.constant 0 : i32
    %c0_i32_0 = arith.constant 0 : i32
    %c0_i32_1 = arith.constant 0 : i32
    return %c0_i32, %c0_i32_0 : i32, i32
  }
  func.func @transform_2(%arg0: i32) -> (i32, i32) {
    %c0_i32 = arith.constant 0 : i32
    %c0_i32_0 = arith.constant 0 : i32
    %c0_i32_1 = arith.constant 0 : i32
    return %c0_i32, %c0_i32_0 : i32, i32
  }
  func.func @transform_3(%arg0: i32) -> (i32, i32) {
    %c0_i32 = arith.constant 0 : i32
    %c0_i32_0 = arith.constant 0 : i32
    %c0_i32_1 = arith.constant 0 : i32
    return %c0_i32, %c0_i32_0 : i32, i32
  }
  func.func @transform_4(%arg0: i32) -> (i32, i32) {
    %c0_i32 = arith.constant 0 : i32
    %c0_i32_0 = arith.constant 0 : i32
    %c0_i32_1 = arith.constant 0 : i32
    return %c0_i32, %c0_i32_0 : i32, i32
  }
  func.func @transform_5(%arg0: i32) -> (i32, i32) {
    %c0_i32 = arith.constant 0 : i32
    %c0_i32_0 = arith.constant 0 : i32
    %c0_i32_1 = arith.constant 0 : i32
    return %c0_i32, %c0_i32_0 : i32, i32
  }
  func.func @transform_6(%arg0: i32) -> (i32, i32) {
    %c0_i32 = arith.constant 0 : i32
    %c0_i32_0 = arith.constant 0 : i32
    %c0_i32_1 = arith.constant 0 : i32
    return %c0_i32, %c0_i32_0 : i32, i32
  }
  func.func @transform_7(%arg0: i32) -> (i32, i32) {
    %c0_i32 = arith.constant 0 : i32
    %c0_i32_0 = arith.constant 0 : i32
    %c0_i32_1 = arith.constant 0 : i32
    return %c0_i32, %c0_i32_0 : i32, i32
  }
  func.func @transform_8(%arg0: i32) -> (i32, i32) {
    %c0_i32 = arith.constant 0 : i32
    %c0_i32_0 = arith.constant 0 : i32
    %c0_i32_1 = arith.constant 0 : i32
    return %c0_i32, %c0_i32_0 : i32, i32
  }
  func.func @transform_9(%arg0: i32) -> (i32, i32) {
    %c0_i32 = arith.constant 0 : i32
    %c0_i32_0 = arith.constant 0 : i32
    return %arg0, %c0_i32 : i32, i32
  }
}

</mosaic_0001>

<llo_original>
// kernel: quantum_nn_forward.1
$region0: #{quantum_nn_forward.1}
  #allocation0 [shape = 'u32[]', space=smem, size = 0x4, offset = 0x4, fixed_abs, tag = 'smem constant byte address 0x4 - core index']
  #allocation1 [shape = 'u32[72,128]{1,0:T(1,128)}', space=vmem, size = 0x9000, scoped, tag = 'internal scratch']
  %s0 = inlined_call_operand.vmem [shape: bf16[8,100], index: 0, kind: input, shape index: {}]
  %s1 = inlined_call_operand.hbm [shape: bf16[100,256], index: 1, kind: input, shape index: {}]
  %s2 = inlined_call_operand.vmem [shape: f32[1,256], index: 2, kind: input, shape index: {}]
  %s3 = inlined_call_operand.hbm [shape: bf16[256,128], index: 3, kind: input, shape index: {}]
  %s4 = inlined_call_operand.vmem [shape: f32[1,128], index: 4, kind: input, shape index: {}]
  %s5 = inlined_call_operand.hbm [shape: bf16[128,128], index: 5, kind: input, shape index: {}]
  %s6 = inlined_call_operand.vmem [shape: f32[1,128], index: 6, kind: input, shape index: {}]
  %s7 = inlined_call_operand.hbm [shape: bf16[128,128], index: 7, kind: input, shape index: {}]
  %s8 = inlined_call_operand.vmem [shape: f32[1,128], index: 8, kind: input, shape index: {}]
  %s9 = inlined_call_operand.hbm [shape: f32[8,128], index: 9, kind: output, shape index: {}]
  %s10 = sld [smem:[#allocation0]]
  $region62: #{quantum_nn_forward.1} parent=0
    _
  %s12 = ssub.s32 1, %s10
  %s13 = scalar_select 0, %s12, %s10
  $region1: #{quantum_nn_forward.1} parent=0
    #allocation2 [shape = 'u8[53248]{0}', space=vmem, size = 0xd000, scoped, tag = 'input window, operand 1, single buffered']
    #allocation3 [shape = 's32[1]{0}', space=sflag, size = 0x4, scoped, tag = 'scoped memory for quantum_nn_forward.1']
    #allocation4 [shape = 's32[1]{0}', space=sflag, size = 0x4, scoped, tag = 'scoped memory for quantum_nn_forward.1']
    #allocation5 [shape = 'u8[65536]{0}', space=vmem, size = 0x10000, scoped, tag = 'input window, operand 3, single buffered']
    #allocation6 [shape = 's32[1]{0}', space=sflag, size = 0x4, scoped, tag = 'scoped memory for quantum_nn_forward.1']
    #allocation7 [shape = 'u8[32768]{0}', space=vmem, size = 0x8000, scoped, tag = 'input window, operand 5, single buffered']
    #allocation8 [shape = 'u8[32768]{0}', space=vmem, size = 0x8000, scoped, tag = 'input window, operand 7, single buffered']
    #allocation9 [shape = 's32[1]{0}', space=sflag, size = 0x4, scoped, tag = 'scoped memory for quantum_nn_forward.1']
    #allocation10 [shape = 'u8[4096]{0}', space=vmem, size = 0x1000, scoped, tag = 'output window, operand 0, single buffered']
    %14 = vsyncpa [#allocation3], 0
    %15 = vsyncpa [#allocation6], 0
    %16 = vsyncpa [#allocation9], 0
    %17 = vsyncpa [#allocation4], 0
    // Predicated region
    $region2: #{quantum_nn_forward.1} parent=1 // pred_check
      _
    $region3: #{quantum_nn_forward.1} parent=1 // pred_check_branch
      %19 = sbr.rel (0) target = $region5
    $region4: #{quantum_nn_forward.1} parent=1 // pred_region
      _
    $region5: #{quantum_nn_forward.1} parent=1 // pred_fallthru
      _
    // Predicated region
    $region6: #{quantum_nn_forward.1} parent=1 // pred_check
      _
    $region7: #{quantum_nn_forward.1} parent=1 // pred_check_branch
      %21 = sbr.rel (0) target = $region9
    $region8: #{quantum_nn_forward.1} parent=1 // pred_region
      %23 = vsyncadd [#allocation3], 0
      %s24 = sshll.u32 %s1, 4
      %s25 = int_to_ptr.hbm [resolvable:$true] %s24
      %s26 = sshll.u32 [#allocation2], 4
      %s27 = int_to_ptr.vmem [resolvable:$true] %s26
      %32 = dma.hbm_to_vmem [thread:$0]  %s25, 1664, %s27, [#allocation3], 128, 128, 8
    $region9: #{quantum_nn_forward.1} parent=1 // pred_fallthru
      _
    // Predicated region
    $region10: #{quantum_nn_forward.1} parent=1 // pred_check
      _
    $region11: #{quantum_nn_forward.1} parent=1 // pred_check_branch
      %34 = sbr.rel (0) target = $region13
    $region12: #{quantum_nn_forward.1} parent=1 // pred_region
      _
    $region13: #{quantum_nn_forward.1} parent=1 // pred_fallthru
      _
    // Predicated region
    $region14: #{quantum_nn_forward.1} parent=1 // pred_check
      _
    $region15: #{quantum_nn_forward.1} parent=1 // pred_check_branch
      %36 = sbr.rel (0) target = $region17
    $region16: #{quantum_nn_forward.1} parent=1 // pred_region
      %38 = vsyncadd [#allocation6], 0
      %s39 = sshll.u32 %s3, 4
      %s40 = int_to_ptr.hbm [resolvable:$true] %s39
      %s41 = sshll.u32 [#allocation5], 4
      %s42 = int_to_ptr.vmem [resolvable:$true] %s41
      %47 = dma.hbm_to_vmem [thread:$0]  %s40, 2048, %s42, [#allocation6], 64, 64, 4
    $region17: #{quantum_nn_forward.1} parent=1 // pred_fallthru
      _
    // Predicated region
    $region18: #{quantum_nn_forward.1} parent=1 // pred_check
      _
    $region19: #{quantum_nn_forward.1} parent=1 // pred_check_branch
      %49 = sbr.rel (0) target = $region21
    $region20: #{quantum_nn_forward.1} parent=1 // pred_region
      _
    $region21: #{quantum_nn_forward.1} parent=1 // pred_fallthru
      _
    // Predicated region
    $region22: #{quantum_nn_forward.1} parent=1 // pred_check
      _
    $region23: #{quantum_nn_forward.1} parent=1 // pred_check_branch
      %51 = sbr.rel (0) target = $region25
    $region24: #{quantum_nn_forward.1} parent=1 // pred_region
      %53 = vsyncadd [#allocation6], 0
      %s54 = sshll.u32 %s5, 4
      %s55 = int_to_ptr.hbm [resolvable:$true] %s54
      %s56 = sshll.u32 [#allocation7], 4
      %s57 = int_to_ptr.vmem [resolvable:$true] %s56
      %62 = dma.hbm_to_vmem [thread:$0]  %s55, 1024, %s57, [#allocation6], 64, 64, 4
    $region25: #{quantum_nn_forward.1} parent=1 // pred_fallthru
      _
    // Predicated region
    $region26: #{quantum_nn_forward.1} parent=1 // pred_check
      _
    $region27: #{quantum_nn_forward.1} parent=1 // pred_check_branch
      %64 = sbr.rel (0) target = $region29
    $region28: #{quantum_nn_forward.1} parent=1 // pred_region
      _
    $region29: #{quantum_nn_forward.1} parent=1 // pred_fallthru
      _
    // Predicated region
    $region30: #{quantum_nn_forward.1} parent=1 // pred_check
      _
    $region31: #{quantum_nn_forward.1} parent=1 // pred_check_branch
      %66 = sbr.rel (0) target = $region33
    $region32: #{quantum_nn_forward.1} parent=1 // pred_region
      %68 = vsyncadd [#allocation9], 0
      %s69 = sshll.u32 %s7, 4
      %s70 = int_to_ptr.hbm [resolvable:$true] %s69
      %s71 = sshll.u32 [#allocation8], 4
      %s72 = int_to_ptr.vmem [resolvable:$true] %s71
      %77 = dma.hbm_to_vmem [thread:$0]  %s70, 1024, %s72, [#allocation9], 64, 64, 4
    $region33: #{quantum_nn_forward.1} parent=1 // pred_fallthru
      _
    // Predicated region
    $region34: #{quantum_nn_forward.1} parent=1 // pred_check
      _
    $region35: #{quantum_nn_forward.1} parent=1 // pred_check_branch
      %79 = sbr.rel (0) target = $region37
    $region36: #{quantum_nn_forward.1} parent=1 // pred_region
      _
    $region37: #{quantum_nn_forward.1} parent=1 // pred_fallthru
      _
    // Predicated region
    $region38: #{quantum_nn_forward.1} parent=1 // pred_check
      _
    $region39: #{quantum_nn_forward.1} parent=1 // pred_check_branch
      %81 = sbr.rel (0) target = $region41
    $region40: #{quantum_nn_forward.1} parent=1 // pred_region
      %83 = dma.done [#allocation3], 1664
    $region41: #{quantum_nn_forward.1} parent=1 // pred_fallthru
      _
    // Predicated region
    $region42: #{quantum_nn_forward.1} parent=1 // pred_check
      _
    $region43: #{quantum_nn_forward.1} parent=1 // pred_check_branch
      %85 = sbr.rel (0) target = $region45
    $region44: #{quantum_nn_forward.1} parent=1 // pred_region
      %87 = dma.done [#allocation6], 2048
    $region45: #{quantum_nn_forward.1} parent=1 // pred_fallthru
      _
    // Predicated region
    $region46: #{quantum_nn_forward.1} parent=1 // pred_check
      _
    $region47: #{quantum_nn_forward.1} parent=1 // pred_check_branch
      %89 = sbr.rel (0) target = $region49
    $region48: #{quantum_nn_forward.1} parent=1 // pred_region
      %91 = dma.done [#allocation6], 1024
    $region49: #{quantum_nn_forward.1} parent=1 // pred_fallthru
      _
    // Predicated region
    $region50: #{quantum_nn_forward.1} parent=1 // pred_check
      _
    $region51: #{quantum_nn_forward.1} parent=1 // pred_check_branch
      %93 = sbr.rel (0) target = $region53
    $region52: #{quantum_nn_forward.1} parent=1 // pred_region
      %95 = dma.done [#allocation9], 1024
    $region53: #{quantum_nn_forward.1} parent=1 // pred_fallthru
      _
    %v97 = vld [vmem:[%s0] sm:$0xf]
    %v98 = vld [vmem:[#allocation2] sm:$0xff]
    %v99 = vld [vmem:[#allocation2 + $0x8] sm:$0xff]
    %v100 = vld [vmem:[#allocation2 + $0x10] sm:$0xff]
    %v101 = vld [vmem:[#allocation2 + $0x18] sm:$0xff]
    %v102 = vld [vmem:[#allocation2 + $0x20] sm:$0xff]
    %v103 = vld [vmem:[#allocation2 + $0x28] sm:$0xff]
    %v104 = vld [vmem:[#allocation2 + $0x30] sm:$0xff]
    %v105 = vld [vmem:[#allocation2 + $0x38] sm:$0xff]
    %v106 = vld [vmem:[#allocation2 + $0x40] sm:$0xff]
    %v107 = vld [vmem:[#allocation2 + $0x48] sm:$0xff]
    %v108 = vld [vmem:[#allocation2 + $0x50] sm:$0xff]
    %v109 = vld [vmem:[#allocation2 + $0x58] sm:$0xff]
    %v110 = vld [vmem:[#allocation2 + $0x60] sm:$0x33]
    %v111 = vld [vmem:[%s2] sm:$0x3]
    %v113 = vperm.slane %v111, 0
    %v114 = vperm.slane %v111, 1
    %v130 = vunpack.c.l.b16 %v98
    %v131 = vunpack.c.h.b16 %v98
    %v132 = vunpack.c.l.b16 %v99
    %v133 = vunpack.c.h.b16 %v99
    %v134 = vunpack.c.l.b16 %v100
    %v135 = vunpack.c.h.b16 %v100
    %v136 = vunpack.c.l.b16 %v101
    %v137 = vunpack.c.h.b16 %v101
    %v138 = vunpack.c.l.b16 %v102
    %v139 = vunpack.c.h.b16 %v102
    %v140 = vunpack.c.l.b16 %v103
    %v141 = vunpack.c.h.b16 %v103
    %v142 = vunpack.c.l.b16 %v104
    %v143 = vunpack.c.h.b16 %v104
    %v144 = vunpack.c.l.b16 %v105
    %v145 = vunpack.c.h.b16 %v105
    %v146 = vunpack.c.l.b16 %v106
    %v147 = vunpack.c.h.b16 %v106
    %v148 = vunpack.c.l.b16 %v107
    %v149 = vunpack.c.h.b16 %v107
    %v150 = vunpack.c.l.b16 %v108
    %v151 = vunpack.c.h.b16 %v108
    %v152 = vunpack.c.l.b16 %v109
    %v153 = vunpack.c.h.b16 %v109
    %v154 = vunpack.c.l.b16 %v110
    %v155 = vunpack.c.h.b16 %v110
    %v156 = vpack.c.b16 %v132, %v130
    %v157 = vpack.c.b16 %v133, %v131
    %v158 = vpack.c.b16 %v136, %v134
    %v159 = vpack.c.b16 %v137, %v135
    %v160 = vpack.c.b16 %v140, %v138
    %v161 = vpack.c.b16 %v141, %v139
    %v162 = vpack.c.b16 %v144, %v142
    %v163 = vpack.c.b16 %v145, %v143
    %v164 = vpack.c.b16 %v148, %v146
    %v165 = vpack.c.b16 %v149, %v147
    %v166 = vpack.c.b16 %v152, %v150
    %v167 = vpack.c.b16 %v153, %v151
    %v168 = vpack.c.b16 %v154, %v154
    %v169 = vpack.c.b16 %v155, %v155
    %vm182 = vcmask 818176
    %v184 = vsel %vm182, %v97, 0
    %vm186 = vcmask 1041408
    %v188 = vsel %vm186, %v168, 0
    %v191 = vsel %vm186, %v169, 0
    %193 = vmatpush.bf16.msra.mxu0 0
    %194 = vmatpush.bf16.msra.mxu0 %v188
    %195 = vmatpush.bf16.msra.mxu0 %v166
    %196 = vmatpush.bf16.msra.mxu0 %v164
    %197 = vmatpush.bf16.msra.mxu0 %v162
    %198 = vmatpush.bf16.msra.mxu0 %v160
    %199 = vmatpush.bf16.msra.mxu0 %v158
    %200 = vmatpush.bf16.msra.mxu0 %v156
    %201 = vmatmul.bf16.gmra.mxu0 %v184
    %v202 = vpop.f32.mrf.mxu0
    %v203 = vadd.f32 %v113, %v202
    %v204 = vpop.f32.mrf.mxu0
    %205 = vdwg.mxu0
    %206 = vmatpush.bf16.msra.mxu0 0
    %207 = vmatpush.bf16.msra.mxu0 %v191
    %208 = vmatpush.bf16.msra.mxu0 %v167
    %209 = vmatpush.bf16.msra.mxu0 %v165
    %210 = vmatpush.bf16.msra.mxu0 %v163
    %211 = vmatpush.bf16.msra.mxu0 %v161
    %212 = vmatpush.bf16.msra.mxu0 %v159
    %213 = vmatpush.bf16.msra.mxu0 %v157
    %214 = vmatmul.bf16.gmra.mxu0 %v184
    %v215 = vpop.f32.mrf.mxu0
    %v216 = vadd.f32 %v114, %v215
    %v217 = vpop.f32.mrf.mxu0
    %218 = vdwg.mxu0
    %vm219 = vcmp.ge.f32.partialorder %v203, 0.0
    %vm220 = vcmp.ge.f32.partialorder %v216, 0.0
    %v221 = vmul.f32 %v203, 0.01
    %v222 = vmul.f32 %v216, 0.01
    %v223 = vsel %vm219, %v203, %v221
    %v224 = vsel %vm220, %v216, %v222
    %v225 = vpack.c.bf16 %v223, %v223
    %v226 = vpack.c.bf16 %v224, %v224
    %v227 = vld [vmem:[#allocation5] sm:$0xf]
    %v228 = vld [vmem:[#allocation5 + $0x4] sm:$0xf]
    %v229 = vld [vmem:[#allocation5 + $0x8] sm:$0xf]
    %v230 = vld [vmem:[#allocation5 + $0xc] sm:$0xf]
    %v231 = vld [vmem:[#allocation5 + $0x10] sm:$0xf]
    %v232 = vld [vmem:[#allocation5 + $0x14] sm:$0xf]
    %v233 = vld [vmem:[#allocation5 + $0x18] sm:$0xf]
    %v234 = vld [vmem:[#allocation5 + $0x1c] sm:$0xf]
    %v235 = vld [vmem:[#allocation5 + $0x20] sm:$0xf]
    %v236 = vld [vmem:[#allocation5 + $0x24] sm:$0xf]
    %v237 = vld [vmem:[#allocation5 + $0x28] sm:$0xf]
    %v238 = vld [vmem:[#allocation5 + $0x2c] sm:$0xf]
    %v239 = vld [vmem:[#allocation5 + $0x30] sm:$0xf]
    %v240 = vld [vmem:[#allocation5 + $0x34] sm:$0xf]
    %v241 = vld [vmem:[#allocation5 + $0x38] sm:$0xf]
    %v242 = vld [vmem:[#allocation5 + $0x3c] sm:$0xf]
    %v243 = vld [vmem:[#allocation5 + $0x40] sm:$0xf]
    %v244 = vld [vmem:[#allocation5 + $0x44] sm:$0xf]
    %v245 = vld [vmem:[#allocation5 + $0x48] sm:$0xf]
    %v246 = vld [vmem:[#allocation5 + $0x4c] sm:$0xf]
    %v247 = vld [vmem:[#allocation5 + $0x50] sm:$0xf]
    %v248 = vld [vmem:[#allocation5 + $0x54] sm:$0xf]
    %v249 = vld [vmem:[#allocation5 + $0x58] sm:$0xf]
    %v250 = vld [vmem:[#allocation5 + $0x5c] sm:$0xf]
    %v251 = vld [vmem:[#allocation5 + $0x60] sm:$0xf]
    %v252 = vld [vmem:[#allocation5 + $0x64] sm:$0xf]
    %v253 = vld [vmem:[#allocation5 + $0x68] sm:$0xf]
    %v254 = vld [vmem:[#allocation5 + $0x6c] sm:$0xf]
    %v255 = vld [vmem:[#allocation5 + $0x70] sm:$0xf]
    %v256 = vld [vmem:[#allocation5 + $0x74] sm:$0xf]
    %v257 = vld [vmem:[#allocation5 + $0x78] sm:$0xf]
    %v258 = vld [vmem:[#allocation5 + $0x7c] sm:$0xf]
    %v259 = vld [vmem:[%s4] sm:$0x1]
    %v261 = vperm.slane %v259, 0
    %v295 = vunpack.c.l.b16 %v227
    %v296 = vunpack.c.l.b16 %v228
    %v297 = vunpack.c.l.b16 %v229
    %v298 = vunpack.c.l.b16 %v230
    %v299 = vunpack.c.l.b16 %v231
    %v300 = vunpack.c.l.b16 %v232
    %v301 = vunpack.c.l.b16 %v233
    %v302 = vunpack.c.l.b16 %v234
    %v303 = vunpack.c.l.b16 %v235
    %v304 = vunpack.c.l.b16 %v236
    %v305 = vunpack.c.l.b16 %v237
    %v306 = vunpack.c.l.b16 %v238
    %v307 = vunpack.c.l.b16 %v239
    %v308 = vunpack.c.l.b16 %v240
    %v309 = vunpack.c.l.b16 %v241
    %v310 = vunpack.c.l.b16 %v242
    %v311 = vunpack.c.l.b16 %v243
    %v312 = vunpack.c.l.b16 %v244
    %v313 = vunpack.c.l.b16 %v245
    %v314 = vunpack.c.l.b16 %v246
    %v315 = vunpack.c.l.b16 %v247
    %v316 = vunpack.c.l.b16 %v248
    %v317 = vunpack.c.l.b16 %v249
    %v318 = vunpack.c.l.b16 %v250
    %v319 = vunpack.c.l.b16 %v251
    %v320 = vunpack.c.l.b16 %v252
    %v321 = vunpack.c.l.b16 %v253
    %v322 = vunpack.c.l.b16 %v254
    %v323 = vunpack.c.l.b16 %v255
    %v324 = vunpack.c.l.b16 %v256
    %v325 = vunpack.c.l.b16 %v257
    %v326 = vunpack.c.l.b16 %v258
    %v327 = vpack.c.b16 %v296, %v295
    %v328 = vpack.c.b16 %v298, %v297
    %v329 = vpack.c.b16 %v300, %v299
    %v330 = vpack.c.b16 %v302, %v301
    %v331 = vpack.c.b16 %v304, %v303
    %v332 = vpack.c.b16 %v306, %v305
    %v333 = vpack.c.b16 %v308, %v307
    %v334 = vpack.c.b16 %v310, %v309
    %v335 = vpack.c.b16 %v312, %v311
    %v336 = vpack.c.b16 %v314, %v313
    %v337 = vpack.c.b16 %v316, %v315
    %v338 = vpack.c.b16 %v318, %v317
    %v339 = vpack.c.b16 %v320, %v319
    %v340 = vpack.c.b16 %v322, %v321
    %v341 = vpack.c.b16 %v324, %v323
    %v342 = vpack.c.b16 %v326, %v325
    %359 = vmatpush.bf16.msra.mxu0 %v334
    %360 = vmatpush.bf16.msra.mxu0 %v333
    %361 = vmatpush.bf16.msra.mxu0 %v332
    %362 = vmatpush.bf16.msra.mxu0 %v331
    %363 = vmatpush.bf16.msra.mxu0 %v330
    %364 = vmatpush.bf16.msra.mxu0 %v329
    %365 = vmatpush.bf16.msra.mxu0 %v328
    %366 = vmatpush.bf16.msra.mxu0 %v327
    %367 = vmatmul.bf16.gmra.mxu0 %v225
    %v368 = vpop.f32.mrf.mxu0
    %v369 = vadd.f32 %v261, %v368
    %v370 = vpop.f32.mrf.mxu0
    %371 = vdwg.mxu0
    %372 = vmatpush.bf16.msra.mxu0 %v342
    %373 = vmatpush.bf16.msra.mxu0 %v341
    %374 = vmatpush.bf16.msra.mxu0 %v340
    %375 = vmatpush.bf16.msra.mxu0 %v339
    %376 = vmatpush.bf16.msra.mxu0 %v338
    %377 = vmatpush.bf16.msra.mxu0 %v337
    %378 = vmatpush.bf16.msra.mxu0 %v336
    %379 = vmatpush.bf16.msra.mxu0 %v335
    %380 = vmatmul.bf16.gmra.mxu0 %v226
    %v381 = vpop.f32.mrf.mxu0
    %v382 = vadd.f32 %v369, %v381
    %v383 = vpop.f32.mrf.mxu0
    %384 = vdwg.mxu0
    %vm385 = vcmp.ge.f32.partialorder %v382, 0.0
    %v386 = vmul.f32 %v382, 0.01
    %v387 = vsel %vm385, %v382, %v386
    %v388 = vpack.c.bf16 %v387, %v387
    %v389 = vld [vmem:[#allocation7] sm:$0xf]
    %v390 = vld [vmem:[#allocation7 + $0x4] sm:$0xf]
    %v391 = vld [vmem:[#allocation7 + $0x8] sm:$0xf]
    %v392 = vld [vmem:[#allocation7 + $0xc] sm:$0xf]
    %v393 = vld [vmem:[#allocation7 + $0x10] sm:$0xf]
    %v394 = vld [vmem:[#allocation7 + $0x14] sm:$0xf]
    %v395 = vld [vmem:[#allocation7 + $0x18] sm:$0xf]
    %v396 = vld [vmem:[#allocation7 + $0x1c] sm:$0xf]
    %v397 = vld [vmem:[#allocation7 + $0x20] sm:$0xf]
    %v398 = vld [vmem:[#allocation7 + $0x24] sm:$0xf]
    %v399 = vld [vmem:[#allocation7 + $0x28] sm:$0xf]
    %v400 = vld [vmem:[#allocation7 + $0x2c] sm:$0xf]
    %v401 = vld [vmem:[#allocation7 + $0x30] sm:$0xf]
    %v402 = vld [vmem:[#allocation7 + $0x34] sm:$0xf]
    %v403 = vld [vmem:[#allocation7 + $0x38] sm:$0xf]
    %v404 = vld [vmem:[#allocation7 + $0x3c] sm:$0xf]
    %v405 = vld [vmem:[%s6] sm:$0x1]
    %v407 = vperm.slane %v405, 0
    %v425 = vunpack.c.l.b16 %v389
    %v426 = vunpack.c.l.b16 %v390
    %v427 = vunpack.c.l.b16 %v391
    %v428 = vunpack.c.l.b16 %v392
    %v429 = vunpack.c.l.b16 %v393
    %v430 = vunpack.c.l.b16 %v394
    %v431 = vunpack.c.l.b16 %v395
    %v432 = vunpack.c.l.b16 %v396
    %v433 = vunpack.c.l.b16 %v397
    %v434 = vunpack.c.l.b16 %v398
    %v435 = vunpack.c.l.b16 %v399
    %v436 = vunpack.c.l.b16 %v400
    %v437 = vunpack.c.l.b16 %v401
    %v438 = vunpack.c.l.b16 %v402
    %v439 = vunpack.c.l.b16 %v403
    %v440 = vunpack.c.l.b16 %v404
    %v441 = vpack.c.b16 %v426, %v425
    %v442 = vpack.c.b16 %v428, %v427
    %v443 = vpack.c.b16 %v430, %v429
    %v444 = vpack.c.b16 %v432, %v431
    %v445 = vpack.c.b16 %v434, %v433
    %v446 = vpack.c.b16 %v436, %v435
    %v447 = vpack.c.b16 %v438, %v437
    %v448 = vpack.c.b16 %v440, %v439
    %457 = vmatpush.bf16.msra.mxu0 %v448
    %458 = vmatpush.bf16.msra.mxu0 %v447
    %459 = vmatpush.bf16.msra.mxu0 %v446
    %460 = vmatpush.bf16.msra.mxu0 %v445
    %461 = vmatpush.bf16.msra.mxu0 %v444
    %462 = vmatpush.bf16.msra.mxu0 %v443
    %463 = vmatpush.bf16.msra.mxu0 %v442
    %464 = vmatpush.bf16.msra.mxu0 %v441
    %465 = vmatmul.bf16.gmra.mxu0 %v388
    %v466 = vpop.f32.mrf.mxu0
    %v467 = vadd.f32 %v407, %v466
    %v468 = vpop.f32.mrf.mxu0
    %469 = vdwg.mxu0
    %vm470 = vcmp.ge.f32.partialorder %v467, 0.0
    %v471 = vmul.f32 %v467, 0.01
    %v472 = vsel %vm470, %v467, %v471
    %v473 = vpack.c.bf16 %v472, %v472
    %v474 = vld [vmem:[#allocation8] sm:$0xf]
    %v475 = vld [vmem:[#allocation8 + $0x4] sm:$0xf]
    %v476 = vld [vmem:[#allocation8 + $0x8] sm:$0xf]
    %v477 = vld [vmem:[#allocation8 + $0xc] sm:$0xf]
    %v478 = vld [vmem:[#allocation8 + $0x10] sm:$0xf]
    %v479 = vld [vmem:[#allocation8 + $0x14] sm:$0xf]
    %v480 = vld [vmem:[#allocation8 + $0x18] sm:$0xf]
    %v481 = vld [vmem:[#allocation8 + $0x1c] sm:$0xf]
    %v482 = vld [vmem:[#allocation8 + $0x20] sm:$0xf]
    %v483 = vld [vmem:[#allocation8 + $0x24] sm:$0xf]
    %v484 = vld [vmem:[#allocation8 + $0x28] sm:$0xf]
    %v485 = vld [vmem:[#allocation8 + $0x2c] sm:$0xf]
    %v486 = vld [vmem:[#allocation8 + $0x30] sm:$0xf]
    %v487 = vld [vmem:[#allocation8 + $0x34] sm:$0xf]
    %v488 = vld [vmem:[#allocation8 + $0x38] sm:$0xf]
    %v489 = vld [vmem:[#allocation8 + $0x3c] sm:$0xf]
    %v490 = vld [vmem:[%s8] sm:$0x1]
    %v492 = vperm.slane %v490, 0
    %v510 = vunpack.c.l.b16 %v474
    %v511 = vunpack.c.l.b16 %v475
    %v512 = vunpack.c.l.b16 %v476
    %v513 = vunpack.c.l.b16 %v477
    %v514 = vunpack.c.l.b16 %v478
    %v515 = vunpack.c.l.b16 %v479
    %v516 = vunpack.c.l.b16 %v480
    %v517 = vunpack.c.l.b16 %v481
    %v518 = vunpack.c.l.b16 %v482
    %v519 = vunpack.c.l.b16 %v483
    %v520 = vunpack.c.l.b16 %v484
    %v521 = vunpack.c.l.b16 %v485
    %v522 = vunpack.c.l.b16 %v486
    %v523 = vunpack.c.l.b16 %v487
    %v524 = vunpack.c.l.b16 %v488
    %v525 = vunpack.c.l.b16 %v489
    %v526 = vpack.c.b16 %v511, %v510
    %v527 = vpack.c.b16 %v513, %v512
    %v528 = vpack.c.b16 %v515, %v514
    %v529 = vpack.c.b16 %v517, %v516
    %v530 = vpack.c.b16 %v519, %v518
    %v531 = vpack.c.b16 %v521, %v520
    %v532 = vpack.c.b16 %v523, %v522
    %v533 = vpack.c.b16 %v525, %v524
    %542 = vmatpush.bf16.msra.mxu0 %v533
    %543 = vmatpush.bf16.msra.mxu0 %v532
    %544 = vmatpush.bf16.msra.mxu0 %v531
    %545 = vmatpush.bf16.msra.mxu0 %v530
    %546 = vmatpush.bf16.msra.mxu0 %v529
    %547 = vmatpush.bf16.msra.mxu0 %v528
    %548 = vmatpush.bf16.msra.mxu0 %v527
    %549 = vmatpush.bf16.msra.mxu0 %v526
    %550 = vmatmul.bf16.gmra.mxu0 %v473
    %v551 = vpop.f32.mrf.mxu0
    %v552 = vadd.f32 %v492, %v551
    %v553 = vpop.f32.mrf.mxu0
    %554 = vdwg.mxu0
    %555 = vst [vmem:[#allocation10] sm:$0xff] %v552
    // Predicated region
    $region54: #{quantum_nn_forward.1} parent=1 // pred_check
      _
    $region55: #{quantum_nn_forward.1} parent=1 // pred_check_branch
      %557 = sbr.rel (0) target = $region57
    $region56: #{quantum_nn_forward.1} parent=1 // pred_region
      %559 = vsyncadd [#allocation4], 0
      %s561 = sshll.u32 [#allocation10], 4
      %s562 = int_to_ptr.vmem [resolvable:$true] %s561
      %s563 = sshll.u32 %s9, 4
      %s564 = int_to_ptr.hbm [resolvable:$true] %s563
      %566 = dma.vmem_to_hbm [thread:$0]  %s562, 128, %s564, [#allocation4]
    $region57: #{quantum_nn_forward.1} parent=1 // pred_fallthru
      _
    // Predicated region
    $region58: #{quantum_nn_forward.1} parent=1 // pred_check
      _
    $region59: #{quantum_nn_forward.1} parent=1 // pred_check_branch
      %568 = sbr.rel (0) target = $region61
    $region60: #{quantum_nn_forward.1} parent=1 // pred_region
      %570 = dma.done [#allocation4], 128
    $region61: #{quantum_nn_forward.1} parent=1 // pred_fallthru
      _
    %571 = vsyncpa [#allocation3], 1
    %572 = vsyncpa [#allocation6], 1
    %573 = vsyncpa [#allocation9], 1
    %574 = vsyncpa [#allocation4], 1

</llo_original>
